<compile_context>
chip_gen: v7x
topology: tpu7x:2x2x1
jax: 0.10.0
libtpu: 0.0.40
codegen_flags: <defaults>
</compile_context>

<pallas_src>
import functools
import math

import jax
import jax.numpy as jnp
from jax.experimental import pallas as pl
from jax.experimental.pallas import tpu as pltpu


def _offset_scale_kernel(x_ref, gamma_ref, beta_ref, out_ref, *, heads):
    # x_ref: (TR, D); gamma_ref / beta_ref: (1, H*D); out_ref: (TR, H*D)
    x = x_ref[...]
    # Replicate x along lanes so a single lane-dense store covers all heads.
    x_rep = jnp.concatenate([x] * heads, axis=-1) if heads > 1 else x
    out_ref[...] = (x_rep * gamma_ref[...] + beta_ref[...]).astype(out_ref.dtype)


@jax.jit
def offset_scale(x, gamma, beta):
    """x: (..., D); gamma/beta: (H, D) -> tuple of H arrays, each (..., D)."""
    *lead, d = x.shape
    heads, d_g = gamma.shape
    assert d_g == d and beta.shape == (heads, d)

    rows = math.prod(lead) if lead else 1
    x2 = x.reshape(rows, d)
    gamma_flat = gamma.reshape(1, heads * d).astype(x.dtype)
    beta_flat = beta.reshape(1, heads * d).astype(x.dtype)

    itemsize = x.dtype.itemsize
    # Double-buffered x tile + out tile per row (gamma/beta are tiny & resident).
    bytes_per_row = 2 * (d + heads * d) * itemsize
    budget = 12 * 1024 * 1024  # fits default scoped VMEM on v5e/v6e/v7x
    max_tr = max(8, min((budget // bytes_per_row) // 8 * 8, 2048))
    tr = rows if rows <= max_tr else max_tr  # full extent or multiple of 8
    grid_r = pl.cdiv(rows, tr)

    out_flat = pl.pallas_call(
        functools.partial(_offset_scale_kernel, heads=heads),
        out_shape=jax.ShapeDtypeStruct((rows, heads * d), x.dtype),
        grid_spec=pltpu.PrefetchScalarGridSpec(
            num_scalar_prefetch=0,
            grid=(grid_r,),
            in_specs=[
                # row tile of x, streamed with auto double-buffering
                pl.BlockSpec((tr, d), lambda r: (r, 0)),
                # flattened gamma / beta, resident across all row tiles
                pl.BlockSpec((1, heads * d), lambda r: (0, 0)),
                pl.BlockSpec((1, heads * d), lambda r: (0, 0)),
            ],
            out_specs=pl.BlockSpec((tr, heads * d), lambda r: (r, 0)),
        ),
        compiler_params=pltpu.CompilerParams(
            dimension_semantics=("parallel",),
        ),
        cost_estimate=pl.CostEstimate(
            flops=2 * rows * heads * d,
            transcendentals=0,
            bytes_accessed=(rows * d + rows * heads * d + 2 * heads * d) * itemsize,
        ),
    )(x2, gamma_flat, beta_flat)

    out = out_flat.reshape(*lead, heads, d)
    # torch's out.unbind(dim=-2): tuple of per-head tensors, each (..., D).
    # Under jit these slices fuse into downstream consumers.
    return tuple(out[..., i, :] for i in range(heads))


if __name__ == "__main__":
    key = jax.random.PRNGKey(0)
    kx, kg = jax.random.split(key)

    B, S, D, H = 2, 8, 32, 4

    x = jax.random.normal(kx, (B, S, D), dtype=jnp.float32)

    # Deterministic parameter init mirroring nn.init.normal_(gamma, std=0.02)
    # and beta = zeros.
    gamma = 0.02 * jax.random.normal(kg, (H, D), dtype=jnp.float32)
    beta = jnp.zeros((H, D), dtype=jnp.float32)

    outs = offset_scale(x, gamma, beta)
    outs = jax.block_until_ready(outs)

    # lightweight correctness check vs plain-JAX reference
    ref = x[..., None, :] * gamma + beta  # (B, S, H, D)
    for h in range(H):
        assert jnp.allclose(outs[h], ref[..., h, :], atol=1e-6), f"head {h} mismatch"

    print("KERNEL_OK")
</pallas_src>

<mosaic_0001>
module attributes {stable_mosaic.version = 11 : i64} {
  func.func @_offset_scale_kernel(%arg0: i32, %arg1: memref<16x32xf32, #tpu.memory_space<vmem>>, %arg2: memref<1x128xf32, #tpu.memory_space<vmem>>, %arg3: memref<1x128xf32, #tpu.memory_space<vmem>>, %arg4: memref<16x128xf32, #tpu.memory_space<vmem>>) attributes {dimension_semantics = [#tpu.dimension_semantics<parallel>], iteration_bounds = array<i64: 1>, scalar_prefetch = 0 : i64, scratch_operands = 0 : i64, tpu.core_type = #tpu.core_type<tc>, window_params = [{transform_indices = @transform_0, window_bounds = array<i64: 16, 32>}, {pipeline_mode = #tpu.pipeline_mode<synchronous>, transform_indices = @transform_1, window_bounds = array<i64: 1, 128>}, {pipeline_mode = #tpu.pipeline_mode<synchronous>, transform_indices = @transform_2, window_bounds = array<i64: 1, 128>}, {transform_indices = @transform_3, window_bounds = array<i64: 16, 128>}]} {
    %c0 = arith.constant 0 : index
    %c0_0 = arith.constant 0 : index
    %0 = vector.load %arg1[%c0, %c0_0] : memref<16x32xf32, #tpu.memory_space<vmem>>, vector<16x32xf32>
    %1 = tpu.concatenate %0, %0, %0, %0 in 1 : vector<16x32xf32>, vector<16x32xf32>, vector<16x32xf32>, vector<16x32xf32> -> vector<16x128xf32>
    %c0_1 = arith.constant 0 : index
    %c0_2 = arith.constant 0 : index
    %2 = vector.load %arg2[%c0_1, %c0_2] : memref<1x128xf32, #tpu.memory_space<vmem>>, vector<1x128xf32>
    %3 = vector.broadcast %2 : vector<1x128xf32> to vector<16x128xf32>
    %4 = arith.mulf %1, %3 : vector<16x128xf32>
    %c0_3 = arith.constant 0 : index
    %c0_4 = arith.constant 0 : index
    %5 = vector.load %arg3[%c0_3, %c0_4] : memref<1x128xf32, #tpu.memory_space<vmem>>, vector<1x128xf32>
    %6 = vector.broadcast %5 : vector<1x128xf32> to vector<16x128xf32>
    %7 = arith.addf %4, %6 : vector<16x128xf32>
    %c0_5 = arith.constant 0 : index
    %c0_6 = arith.constant 0 : index
    %8 = vector.load %arg4[%c0_5, %c0_6] : memref<16x128xf32, #tpu.memory_space<vmem>>, vector<16x128xf32>
    tpu.vector_store %arg4[%c0_5, %c0_6], %7 {strides = array<i32>} : memref<16x128xf32, #tpu.memory_space<vmem>>, vector<16x128xf32>,
    return
  }
  func.func @transform_0(%arg0: i32) -> (i32, i32) {
    %c0_i32 = arith.constant 0 : i32
    %c0_i32_0 = arith.constant 0 : i32
    return %arg0, %c0_i32 : i32, i32
  }
  func.func @transform_1(%arg0: i32) -> (i32, i32) {
    %c0_i32 = arith.constant 0 : i32
    %c0_i32_0 = arith.constant 0 : i32
    %c0_i32_1 = arith.constant 0 : i32
    return %c0_i32, %c0_i32_0 : i32, i32
  }
  func.func @transform_2(%arg0: i32) -> (i32, i32) {
    %c0_i32 = arith.constant 0 : i32
    %c0_i32_0 = arith.constant 0 : i32
    %c0_i32_1 = arith.constant 0 : i32
    return %c0_i32, %c0_i32_0 : i32, i32
  }
  func.func @transform_3(%arg0: i32) -> (i32, i32) {
    %c0_i32 = arith.constant 0 : i32
    %c0_i32_0 = arith.constant 0 : i32
    return %arg0, %c0_i32 : i32, i32
  }
}

</mosaic_0001>

<llo_original>
// kernel: offset_scale.1
$region0: #{offset_scale.1}
  #allocation0 [shape = 'u32[]', space=smem, size = 0x4, offset = 0x4, fixed_abs, tag = 'smem constant byte address 0x4 - core index']
  #allocation1 [shape = 'u32[144,128]{1,0:T(1,128)}', space=vmem, size = 0x12000, scoped, tag = 'internal scratch']
  %s0 = inlined_call_operand.hbm [shape: f32[16,32], index: 0, kind: input, shape index: {}]
  %s1 = inlined_call_operand.vmem [shape: f32[1,128], index: 1, kind: input, shape index: {}]
  %s2 = inlined_call_operand.vmem [shape: f32[1,128], index: 2, kind: input, shape index: {}]
  %s3 = inlined_call_operand.vmem [shape: f32[16,128], index: 3, kind: output, shape index: {}]
  %s4 = sld [smem:[#allocation0]]
  $region26: #{offset_scale.1} parent=0
    _
  %s6 = ssub.s32 1, %s4
  %s7 = scalar_select 0, %s6, %s4
  $region1: #{offset_scale.1} parent=0
    #allocation2 [shape = 'u8[8192]{0}', space=vmem, size = 0x2000, scoped, tag = 'input window, operand 0, single buffered']
    #allocation3 [shape = 's32[1]{0}', space=sflag, size = 0x4, scoped, tag = 'scoped memory for offset_scale.1']
    %8 = vsyncpa [#allocation3], 0
    // Predicated region
    $region2: #{offset_scale.1} parent=1 // pred_check
      _
    $region3: #{offset_scale.1} parent=1 // pred_check_branch
      %10 = sbr.rel (0) target = $region5
    $region4: #{offset_scale.1} parent=1 // pred_region
      %s12 = ssub.s32 256, 256
      %13 = vsyncadd [#allocation3], %s12
      %s14 = sshll.u32 [#allocation2], 4
      %s15 = int_to_ptr.vmem [resolvable:$true] %s14
      %20 = dma.hbm_to_vmem [thread:$0]  %s0, 256, %s15, [#allocation3], 128, 128, 8
    $region5: #{offset_scale.1} parent=1 // pred_fallthru
      _
    // Predicated region
    $region6: #{offset_scale.1} parent=1 // pred_check
      _
    $region7: #{offset_scale.1} parent=1 // pred_check_branch
      %22 = sbr.rel (0) target = $region9
    $region8: #{offset_scale.1} parent=1 // pred_region
      _
    $region9: #{offset_scale.1} parent=1 // pred_fallthru
      _
    // Predicated region
    $region10: #{offset_scale.1} parent=1 // pred_check
      _
    $region11: #{offset_scale.1} parent=1 // pred_check_branch
      %24 = sbr.rel (0) target = $region13
    $region12: #{offset_scale.1} parent=1 // pred_region
      _
    $region13: #{offset_scale.1} parent=1 // pred_fallthru
      _
    // Predicated region
    $region14: #{offset_scale.1} parent=1 // pred_check
      _
    $region15: #{offset_scale.1} parent=1 // pred_check_branch
      %26 = sbr.rel (0) target = $region17
    $region16: #{offset_scale.1} parent=1 // pred_region
      %27 = dma.done [#allocation3], 256
    $region17: #{offset_scale.1} parent=1 // pred_fallthru
      _
    %v28 = vld [vmem:[#allocation2] sm:$0xff]
    %v29 = vld [vmem:[#allocation2 + $0x8] sm:$0xff]
    %32 = vrot.lane.b32.xlu0 %v28, 32
    %v33 = vpop.permute.xlu0 %32
    %34 = vrot.lane.b32.xlu0 %v29, 32
    %v35 = vpop.permute.xlu0 %34
    %38 = vrot.lane.b32.xlu0 %v28, 64
    %v39 = vpop.permute.xlu0 %38
    %40 = vrot.lane.b32.xlu0 %v29, 64
    %v41 = vpop.permute.xlu0 %40
    %44 = vrot.lane.b32.xlu0 %v28, 96
    %v45 = vpop.permute.xlu0 %44
    %46 = vrot.lane.b32.xlu0 %v29, 96
    %v47 = vpop.permute.xlu0 %46
    %vm50 = vcmask 261120
    %v51 = vsel %vm50, %v28, %v33
    %v52 = vsel %vm50, %v29, %v35
    %vm53 = vcmask 523264
    %v54 = vsel %vm53, %v51, %v39
    %v55 = vsel %vm53, %v52, %v41
    %vm56 = vcmask 785408
    %v57 = vsel %vm56, %v54, %v45
    %v58 = vsel %vm56, %v55, %v47
    %v59 = vld [vmem:[%s1] sm:$0x1]
    %v61 = vlaneseq
    %v62 = vshrl.u32 %v61, 7
    %v63 = vsub.s32 0, %v62
    %v64 = vrot.slane %v59, %v63
    %v66 = vmul.f32 %v57, %v64
    %v67 = vmul.f32 %v58, %v64
    %v68 = vld [vmem:[%s2] sm:$0x1]
    %v70 = vlaneseq
    %v71 = vshrl.u32 %v70, 7
    %v72 = vsub.s32 0, %v71
    %v73 = vrot.slane %v68, %v72
    %v75 = vadd.f32 %v66, %v73
    %v76 = vadd.f32 %v67, %v73
    %77 = vst [vmem:[%s3] sm:$0xff] %v75
    %78 = vst [vmem:[%s3 + $0x8] sm:$0xff] %v76
    // Predicated region
    $region18: #{offset_scale.1} parent=1 // pred_check
      _
    $region19: #{offset_scale.1} parent=1 // pred_check_branch
      %80 = sbr.rel (0) target = $region21
    $region20: #{offset_scale.1} parent=1 // pred_region
      _
    $region21: #{offset_scale.1} parent=1 // pred_fallthru
      _
    // Predicated region
    $region22: #{offset_scale.1} parent=1 // pred_check
      _
    $region23: #{offset_scale.1} parent=1 // pred_check_branch
      %82 = sbr.rel (0) target = $region25
    $region24: #{offset_scale.1} parent=1 // pred_region
      _
    $region25: #{offset_scale.1} parent=1 // pred_fallthru
      _
    %83 = vsyncpa [#allocation3], 1

</llo_original>
